<compile_context>
chip_gen: v5e
topology: v5e:2x2
jax: 0.10.0
libtpu: 0.0.40
codegen_flags: <defaults>
</compile_context>

<pallas_src>
import math

import jax
import jax.numpy as jnp
from jax.experimental import pallas as pl
from jax.experimental.pallas import tpu as pltpu

_A = math.sqrt(2.0) / math.pi        # matches torch.sqrt(2)/math.pi
_B = _A * 0.044714                   # folded cubic coefficient (A * 0.044714)

_LANE = 512                          # lane-dense output width (multiple of 128)
_TARGET_BLOCK_ROWS = 2048            # 2048 x 512 x 4B = 4 MiB per f32 block


def _gelu_kernel(x_ref, o_ref):
    x = x_ref[...]
    x2 = x * x
    inner = x * (_A + _B * x2)       # == A*(x + 0.044714*x^3) up to f32 rounding
    o_ref[...] = 0.5 * x * (1.0 + jnp.tanh(inner))


def gelu(x):
    """Apply GPT-1 GeLU elementwise via a Pallas TPU kernel (any rank/dtype)."""
    orig_shape = x.shape
    dtype = x.dtype
    n = x.size
    if n == 0:
        return x

    lane = _LANE
    # Minimal padding: only up to the next lane multiple (NOT a full block).
    # Safe because gelu(0) == 0 with these constants, and the tail is sliced off.
    n_pad = pl.cdiv(n, lane) * lane
    x_flat = jnp.reshape(x, (-1,))
    if n_pad != n:
        x_flat = jnp.pad(x_flat, (0, n_pad - n))
    rows = n_pad // lane
    x2d = jnp.reshape(x_flat, (rows, lane))

    # Block rows: either the full row extent (small inputs, single grid step)
    # or a 4 MiB tile; the last grid block may be partial (Pallas masks it).
    block_rows = rows if rows <= _TARGET_BLOCK_ROWS else _TARGET_BLOCK_ROWS
    grid = pl.cdiv(rows, block_rows)

    out2d = pl.pallas_call(
        _gelu_kernel,
        out_shape=jax.ShapeDtypeStruct((rows, lane), dtype),
        grid_spec=pltpu.PrefetchScalarGridSpec(
            num_scalar_prefetch=0,
            grid=(grid,),
            in_specs=[pl.BlockSpec((block_rows, lane), lambda i: (i, 0))],
            out_specs=pl.BlockSpec((block_rows, lane), lambda i: (i, 0)),
        ),
        compiler_params=pltpu.CompilerParams(
            dimension_semantics=("parallel",),
            vmem_limit_bytes=48 * 1024 * 1024,
        ),
    )(x2d)

    out_flat = jnp.reshape(out2d, (-1,))
    if n_pad != n:
        out_flat = out_flat[:n]
    return jnp.reshape(out_flat, orig_shape)


def gelu_ref(x):
    """Pure-JAX reference mirroring the PyTorch forward exactly."""
    return 0.5 * x * (1.0 + jnp.tanh(_A * (x + 0.044714 * x ** 3)))


if __name__ == "__main__":
    key = jax.random.PRNGKey(0)
    # GeLU has no fixed input shape; use a small activation-like tensor
    # (batch=2, seq=8, hidden=32) as the GPT-1 forward would see.
    x = jax.random.normal(key, (2, 8, 32), dtype=jnp.float32)

    out = gelu(x)
    out = jax.block_until_ready(out)

    ref = gelu_ref(x)
    assert out.shape == x.shape and out.dtype == x.dtype
    assert jnp.allclose(out, ref, atol=1e-5, rtol=1e-5)

    # Also exercise a larger, multi-block, non-divisible case to cover the
    # partial-last-block and padding paths.
    x_big = jax.random.normal(jax.random.PRNGKey(1), (3, 2050, 384), dtype=jnp.float32)
    out_big = jax.block_until_ready(gelu(x_big))
    assert jnp.allclose(out_big, gelu_ref(x_big), atol=1e-5, rtol=1e-5)

    print("KERNEL_OK")
</pallas_src>

<mosaic_0001>
module attributes {stable_mosaic.version = 11 : i64} {
  func.func @_gelu_kernel(%arg0: i32, %arg1: memref<1x512xf32, #tpu.memory_space<vmem>>, %arg2: memref<1x512xf32, #tpu.memory_space<vmem>>) attributes {dimension_semantics = [#tpu.dimension_semantics<parallel>], iteration_bounds = array<i64: 1>, scalar_prefetch = 0 : i64, scratch_operands = 0 : i64, tpu.core_type = #tpu.core_type<tc>, window_params = [{transform_indices = @transform_0, window_bounds = array<i64: 1, 512>}, {transform_indices = @transform_1, window_bounds = array<i64: 1, 512>}]} {
    %c0 = arith.constant 0 : index
    %c0_0 = arith.constant 0 : index
    %0 = vector.load %arg1[%c0, %c0_0] : memref<1x512xf32, #tpu.memory_space<vmem>>, vector<1x512xf32>
    %1 = arith.mulf %0, %0 : vector<1x512xf32>
    %cst = arith.constant 0.0201283712 : f32
    %2 = vector.broadcast %cst : f32 to vector<1x512xf32>
    %3 = arith.mulf %2, %1 : vector<1x512xf32>
    %cst_1 = arith.constant 0.450158149 : f32
    %4 = vector.broadcast %cst_1 : f32 to vector<1x512xf32>
    %5 = arith.addf %4, %3 : vector<1x512xf32>
    %6 = arith.mulf %0, %5 : vector<1x512xf32>
    %cst_2 = arith.constant 5.000000e-01 : f32
    %7 = vector.broadcast %cst_2 : f32 to vector<1x512xf32>
    %8 = arith.mulf %7, %0 : vector<1x512xf32>
    %9 = math.tanh %6 : vector<1x512xf32>
    %cst_3 = arith.constant 1.000000e+00 : f32
    %10 = vector.broadcast %cst_3 : f32 to vector<1x512xf32>
    %11 = arith.addf %10, %9 : vector<1x512xf32>
    %12 = arith.mulf %8, %11 : vector<1x512xf32>
    %c0_4 = arith.constant 0 : index
    %c0_5 = arith.constant 0 : index
    %13 = vector.load %arg2[%c0_4, %c0_5] : memref<1x512xf32, #tpu.memory_space<vmem>>, vector<1x512xf32>
    tpu.vector_store %arg2[%c0_4, %c0_5], %12 {strides = array<i32>} : memref<1x512xf32, #tpu.memory_space<vmem>>, vector<1x512xf32>,
    return
  }
  func.func @transform_0(%arg0: i32) -> (i32, i32) {
    %c0_i32 = arith.constant 0 : i32
    %c0_i32_0 = arith.constant 0 : i32
    return %arg0, %c0_i32 : i32, i32
  }
  func.func @transform_1(%arg0: i32) -> (i32, i32) {
    %c0_i32 = arith.constant 0 : i32
    %c0_i32_0 = arith.constant 0 : i32
    return %arg0, %c0_i32 : i32, i32
  }
}

</mosaic_0001>

<llo_original>
// kernel: tpu_custom_call.1
$region0: #{tpu_custom_call.1}
  #allocation0 [shape = 'u32[]', space=smem, size = 0x4, offset = 0x4, fixed_abs, tag = 'smem constant byte address 0x4 - core index']
  #allocation1 [shape = 'u32[72,128]{1,0:T(1,128)}', space=vmem, size = 0x9000, scoped, tag = 'internal scratch']
  %s0 = inlined_call_operand.hbm [shape: f32[1,512], index: 0, kind: input, shape index: {}]
  %s1 = inlined_call_operand.hbm [shape: f32[1,512], index: 1, kind: output, shape index: {}]
  %s2 = sld [smem:[#allocation0]]
  $region18: #{tpu_custom_call.1} parent=0
    _
  %s4 = ssub.s32 1, %s2
  %s5 = scalar_select 0, %s4, %s2
  $region1: #{tpu_custom_call.1} parent=0
    #allocation2 [shape = 'u8[2048]{0}', space=vmem, size = 0x800, scoped, tag = 'input window, operand 0, single buffered']
    #allocation3 [shape = 's32[1]{0}', space=sflag, size = 0x4, scoped, tag = 'scoped memory for tpu_custom_call.1']
    #allocation4 [shape = 's32[1]{0}', space=sflag, size = 0x4, scoped, tag = 'scoped memory for tpu_custom_call.1']
    #allocation5 [shape = 'u8[2048]{0}', space=vmem, size = 0x800, scoped, tag = 'output window, operand 0, single buffered']
    %6 = vsyncpa [#allocation3], 0
    %7 = vsyncpa [#allocation4], 0
    // Predicated region
    $region2: #{tpu_custom_call.1} parent=1 // pred_check
      _
    $region3: #{tpu_custom_call.1} parent=1 // pred_check_branch
      %9 = sbr.rel (0) target = $region5
    $region4: #{tpu_custom_call.1} parent=1 // pred_region
      %11 = vsyncadd [#allocation3], 0
      %s13 = sshll.u32 %s0, 4
      %s14 = int_to_ptr.hbm [resolvable:$true] %s13
      %s15 = sshll.u32 [#allocation2], 4
      %s16 = int_to_ptr.vmem [resolvable:$true] %s15
      %18 = dma.hbm_to_vmem [thread:$0]  %s14, 64, %s16, [#allocation3]
    $region5: #{tpu_custom_call.1} parent=1 // pred_fallthru
      _
    // Predicated region
    $region6: #{tpu_custom_call.1} parent=1 // pred_check
      _
    $region7: #{tpu_custom_call.1} parent=1 // pred_check_branch
      %20 = sbr.rel (0) target = $region9
    $region8: #{tpu_custom_call.1} parent=1 // pred_region
      %22 = dma.done [#allocation3], 64
    $region9: #{tpu_custom_call.1} parent=1 // pred_fallthru
      _
    %v23 = vld [vmem:[#allocation2] sm:$0xf]
    %v24 = vmul.f32 %v23, %v23
    %v25 = vmul.f32 %v24, 0.020128371
    %v26 = vadd.f32 %v25, 0.45015815
    %v27 = vmul.f32 %v23, %v26
    %v28 = vmul.f32 %v23, 0.5
    %v29 = vtanh.pop %v27
    %v30 = vadd.f32 %v29, 1.0
    %v31 = vmul.f32 %v28, %v30
    %v32 = vlaneseq
    %vm33 = vcmp.ge.s32.totalorder %v32, 0
    %vm34 = vcmp.lt.s32.totalorder %v32, 512
    %vm35 = vmand %vm33, %vm34
    %36 = vst.msk [vmem:[#allocation5] sm:$0xf] %vm35, %v31
    // Predicated region
    $region10: #{tpu_custom_call.1} parent=1 // pred_check
      _
    $region11: #{tpu_custom_call.1} parent=1 // pred_check_branch
      %38 = sbr.rel (0) target = $region13
    $region12: #{tpu_custom_call.1} parent=1 // pred_region
      %40 = vsyncadd [#allocation4], 0
      %s42 = sshll.u32 [#allocation5], 4
      %s43 = int_to_ptr.vmem [resolvable:$true] %s42
      %s44 = sshll.u32 %s1, 4
      %s45 = int_to_ptr.hbm [resolvable:$true] %s44
      %47 = dma.vmem_to_hbm [thread:$0]  %s43, 64, %s45, [#allocation4]
    $region13: #{tpu_custom_call.1} parent=1 // pred_fallthru
      _
    // Predicated region
    $region14: #{tpu_custom_call.1} parent=1 // pred_check
      _
    $region15: #{tpu_custom_call.1} parent=1 // pred_check_branch
      %49 = sbr.rel (0) target = $region17
    $region16: #{tpu_custom_call.1} parent=1 // pred_region
      %51 = dma.done [#allocation4], 64
    $region17: #{tpu_custom_call.1} parent=1 // pred_fallthru
      _
    %52 = vsyncpa [#allocation3], 1
    %53 = vsyncpa [#allocation4], 1

</llo_original>
